<compile_context>
chip_gen: v7x
topology: tpu7x:2x2x1
jax: 0.10.0
libtpu: 0.0.40
codegen_flags: <defaults>
</compile_context>

<pallas_src>
import functools

import jax
import jax.numpy as jnp
from jax.experimental import pallas as pl
from jax.experimental.pallas import tpu as pltpu


def _round_up(a, b):
    return ((a + b - 1) // b) * b


def _choose_row_tile(M, tm_cap):
    """Sublane-aligned (mult. of 8) row tile, <= tm_cap.

    Prefers >= 2 grid steps for non-trivial M (so both v7x TensorCores are
    used) and an even block count when there are only a few blocks.
    """
    M8 = _round_up(max(M, 1), 8)
    if M8 <= 16:                       # tiny problem: one block
        return M8
    n = max(2, pl.cdiv(M8, tm_cap))    # at least two grid steps
    if n < 8 and n % 2 == 1:
        n += 1                         # even split across the two v7x cores
    tm_eff = _round_up(pl.cdiv(M8, n), 8)
    return min(tm_eff, tm_cap)


def _decoder_kernel(x_ref, w1_ref, b1_ref, w2_ref, b2_ref,
                    w3_ref, b3_ref, w4_ref, b4_ref, o_ref):
    # x_ref: (tm, c_d*g_d) f32 tile.  The c_d sum is folded into the row-tiled
    # W1, so the first matmul performs the reduction on the MXU for free.
    x = x_ref[...].astype(jnp.bfloat16)           # cast in-kernel (no XLA pre-pass)
    h = jnp.dot(x, w1_ref[...], preferred_element_type=jnp.float32) + b1_ref[...]
    h = jnp.maximum(h, 0.0).astype(jnp.bfloat16)
    h = jnp.dot(h, w2_ref[...], preferred_element_type=jnp.float32) + b2_ref[...]
    h = jnp.maximum(h, 0.0).astype(jnp.bfloat16)
    h = jnp.dot(h, w3_ref[...], preferred_element_type=jnp.float32) + b3_ref[...]
    h = jnp.maximum(h, 0.0).astype(jnp.bfloat16)
    o = jnp.dot(h, w4_ref[...], preferred_element_type=jnp.float32) + b4_ref[...]
    o_ref[...] = o.astype(o_ref.dtype)            # single fused (tm, out+1) store


def observable_decoder_forward(x, params, *, tm=4096, vmem_limit_bytes=None):
    """x: [B, N, T, c_d, g_d] float32.  Returns (out [B,N,T,out], confi [B,N,T,1])."""
    B, N, T, c_d, g_d = x.shape
    M = B * N * T

    w1, b1, w2, b2, w3, b3, w4, b4 = params
    Op1 = w4.shape[1]                  # output_size + 1
    out_size = Op1 - 1
    K = c_d * g_d

    # Lane-dense 2-D input view (free reshape, stays f32 -> no extra HBM pass).
    x_flat = x.reshape(M, K)
    # Fold the c_d sum into a row-tiled W1; weights are tiny, bf16 cast is cheap.
    w1_eff = jnp.tile(w1, (c_d, 1)).astype(jnp.bfloat16)     # (c_d*g_d, H)
    w2b = w2.astype(jnp.bfloat16)
    w3b = w3.astype(jnp.bfloat16)
    w4b = w4.astype(jnp.bfloat16)

    tm_eff = _choose_row_tile(M, tm)
    n_blocks = pl.cdiv(M, tm_eff)      # ragged tail handled by Pallas OOB clipping

    full = lambda arr: pl.BlockSpec(arr.shape, lambda i: (0,) * arr.ndim)

    cp_kwargs = dict(dimension_semantics=("parallel",))
    if vmem_limit_bytes is not None:
        cp_kwargs["vmem_limit_bytes"] = vmem_limit_bytes

    o_flat = pl.pallas_call(
        _decoder_kernel,
        out_shape=jax.ShapeDtypeStruct((M, Op1), jnp.float32),
        grid_spec=pltpu.PrefetchScalarGridSpec(
            num_scalar_prefetch=0,
            grid=(n_blocks,),
            in_specs=[
                pl.BlockSpec((tm_eff, K), lambda i: (i, 0)),
                full(w1_eff), full(b1),
                full(w2b), full(b2),
                full(w3b), full(b3),
                full(w4b), full(b4),
            ],
            out_specs=pl.BlockSpec((tm_eff, Op1), lambda i: (i, 0)),
        ),
        compiler_params=pltpu.CompilerParams(**cp_kwargs),
    )(x_flat, w1_eff, b1, w2b, b2, w3b, b3, w4b, b4)

    # Same split the PyTorch module performs on `o`.
    o = o_flat.reshape(B, N, T, Op1)
    out = o[..., :out_size]
    confi = o[..., out_size:]
    return out, confi


def init_params(key, s, hidden_size, output_size):
    """Xavier-normal weights (stored as (in, out)), zero biases — matches module init."""
    dims = [(s, hidden_size),
            (hidden_size, hidden_size),
            (hidden_size, hidden_size),
            (hidden_size, output_size + 1)]
    params = []
    for (fan_in, fan_out) in dims:
        key, sub = jax.random.split(key)
        std = (2.0 / (fan_in + fan_out)) ** 0.5
        w = std * jax.random.normal(sub, (fan_in, fan_out), dtype=jnp.float32)
        b = jnp.zeros((1, fan_out), dtype=jnp.float32)
        params += [w, b]
    return tuple(params)


def _reference(x, params):
    """Pure-f32 reference matching the PyTorch module semantics."""
    w1, b1, w2, b2, w3, b3, w4, b4 = params
    B, N, T, c_d, g_d = x.shape
    h = x.reshape(B * N * T, c_d, g_d).sum(axis=1)
    h = jnp.maximum(h @ w1 + b1, 0.0)
    h = jnp.maximum(h @ w2 + b2, 0.0)
    h = jnp.maximum(h @ w3 + b3, 0.0)
    o = (h @ w4 + b4).reshape(B, N, T, -1)
    return o[..., :-1], o[..., -1:]


if __name__ == "__main__":
    # Small shapes consistent with the forward: x is 5-D [B, N, T, c_d, g_d], s == g_d.
    # M = B*N*T = 66 deliberately exercises the cdiv grid + clipped-tail-store path
    # and the even 2-block split.
    B, N, T, c_d, g_d = 2, 3, 11, 4, 8
    hidden_size, output_size = 32, 8

    key = jax.random.PRNGKey(0)
    kx, kp = jax.random.split(key)
    x = jax.random.normal(kx, (B, N, T, c_d, g_d), dtype=jnp.float32)
    params = init_params(kp, g_d, hidden_size, output_size)

    fwd = jax.jit(functools.partial(observable_decoder_forward, tm=4096))
    out, confi = fwd(x, params)
    out = jax.block_until_ready(out)
    confi = jax.block_until_ready(confi)

    ref_out, ref_confi = _reference(x, params)
    assert out.shape == (B, N, T, output_size)
    assert confi.shape == (B, N, T, 1)
    # bf16 matmul operands vs an f32 reference -> bf16-level tolerance.
    assert jnp.allclose(out, ref_out, rtol=2e-2, atol=2e-2)
    assert jnp.allclose(confi, ref_confi, rtol=2e-2, atol=2e-2)

    print("KERNEL_OK")
</pallas_src>

<mosaic_0001>
module attributes {stable_mosaic.version = 11 : i64} {
  func.func @_decoder_kernel(%arg0: i32, %arg1: memref<40x32xf32, #tpu.memory_space<vmem>>, %arg2: memref<32x32xbf16, #tpu.memory_space<vmem>>, %arg3: memref<1x32xf32, #tpu.memory_space<vmem>>, %arg4: memref<32x32xbf16, #tpu.memory_space<vmem>>, %arg5: memref<1x32xf32, #tpu.memory_space<vmem>>, %arg6: memref<32x32xbf16, #tpu.memory_space<vmem>>, %arg7: memref<1x32xf32, #tpu.memory_space<vmem>>, %arg8: memref<32x9xbf16, #tpu.memory_space<vmem>>, %arg9: memref<1x9xf32, #tpu.memory_space<vmem>>, %arg10: memref<40x9xf32, #tpu.memory_space<vmem>>) attributes {dimension_semantics = [#tpu.dimension_semantics<parallel>], iteration_bounds = array<i64: 2>, scalar_prefetch = 0 : i64, scratch_operands = 0 : i64, tpu.core_type = #tpu.core_type<tc>, window_params = [{transform_indices = @transform_0, window_bounds = array<i64: 40, 32>}, {pipeline_mode = #tpu.pipeline_mode<synchronous>, transform_indices = @transform_1, window_bounds = array<i64: 32, 32>}, {pipeline_mode = #tpu.pipeline_mode<synchronous>, transform_indices = @transform_2, window_bounds = array<i64: 1, 32>}, {pipeline_mode = #tpu.pipeline_mode<synchronous>, transform_indices = @transform_3, window_bounds = array<i64: 32, 32>}, {pipeline_mode = #tpu.pipeline_mode<synchronous>, transform_indices = @transform_4, window_bounds = array<i64: 1, 32>}, {pipeline_mode = #tpu.pipeline_mode<synchronous>, transform_indices = @transform_5, window_bounds = array<i64: 32, 32>}, {pipeline_mode = #tpu.pipeline_mode<synchronous>, transform_indices = @transform_6, window_bounds = array<i64: 1, 32>}, {pipeline_mode = #tpu.pipeline_mode<synchronous>, transform_indices = @transform_7, window_bounds = array<i64: 32, 9>}, {pipeline_mode = #tpu.pipeline_mode<synchronous>, transform_indices = @transform_8, window_bounds = array<i64: 1, 9>}, {transform_indices = @transform_9, window_bounds = array<i64: 40, 9>}]} {
    %c0 = arith.constant 0 : index
    %c0_0 = arith.constant 0 : index
    %0 = vector.load %arg1[%c0, %c0_0] : memref<40x32xf32, #tpu.memory_space<vmem>>, vector<40x32xf32>
    %1 = arith.truncf %0 : vector<40x32xf32> to vector<40x32xbf16>
    %c0_1 = arith.constant 0 : index
    %c0_2 = arith.constant 0 : index
    %2 = vector.load %arg2[%c0_1, %c0_2] : memref<32x32xbf16, #tpu.memory_space<vmem>>, vector<32x32xbf16>
    %cst = arith.constant dense<0.000000e+00> : vector<40x32xf32>
    %3 = tpu.matmul %1, %2, %cst {dimension_numbers = #tpu.dot_dimension_numbers<[1], [0], [0], [1], [0, 0, 1, 1], [], []>} : vector<40x32xbf16>, vector<32x32xbf16>, vector<40x32xf32> -> vector<40x32xf32>
    %c0_3 = arith.constant 0 : index
    %c0_4 = arith.constant 0 : index
    %4 = vector.load %arg3[%c0_3, %c0_4] : memref<1x32xf32, #tpu.memory_space<vmem>>, vector<1x32xf32>
    %5 = vector.broadcast %4 : vector<1x32xf32> to vector<40x32xf32>
    %6 = arith.addf %3, %5 : vector<40x32xf32>
    %cst_5 = arith.constant 0.000000e+00 : f32
    %7 = vector.broadcast %cst_5 : f32 to vector<40x32xf32>
    %8 = arith.maximumf %6, %7 : vector<40x32xf32>
    %9 = arith.truncf %8 : vector<40x32xf32> to vector<40x32xbf16>
    %c0_6 = arith.constant 0 : index
    %c0_7 = arith.constant 0 : index
    %10 = vector.load %arg4[%c0_6, %c0_7] : memref<32x32xbf16, #tpu.memory_space<vmem>>, vector<32x32xbf16>
    %cst_8 = arith.constant dense<0.000000e+00> : vector<40x32xf32>
    %11 = tpu.matmul %9, %10, %cst_8 {dimension_numbers = #tpu.dot_dimension_numbers<[1], [0], [0], [1], [0, 0, 1, 1], [], []>} : vector<40x32xbf16>, vector<32x32xbf16>, vector<40x32xf32> -> vector<40x32xf32>
    %c0_9 = arith.constant 0 : index
    %c0_10 = arith.constant 0 : index
    %12 = vector.load %arg5[%c0_9, %c0_10] : memref<1x32xf32, #tpu.memory_space<vmem>>, vector<1x32xf32>
    %13 = vector.broadcast %12 : vector<1x32xf32> to vector<40x32xf32>
    %14 = arith.addf %11, %13 : vector<40x32xf32>
    %cst_11 = arith.constant 0.000000e+00 : f32
    %15 = vector.broadcast %cst_11 : f32 to vector<40x32xf32>
    %16 = arith.maximumf %14, %15 : vector<40x32xf32>
    %17 = arith.truncf %16 : vector<40x32xf32> to vector<40x32xbf16>
    %c0_12 = arith.constant 0 : index
    %c0_13 = arith.constant 0 : index
    %18 = vector.load %arg6[%c0_12, %c0_13] : memref<32x32xbf16, #tpu.memory_space<vmem>>, vector<32x32xbf16>
    %cst_14 = arith.constant dense<0.000000e+00> : vector<40x32xf32>
    %19 = tpu.matmul %17, %18, %cst_14 {dimension_numbers = #tpu.dot_dimension_numbers<[1], [0], [0], [1], [0, 0, 1, 1], [], []>} : vector<40x32xbf16>, vector<32x32xbf16>, vector<40x32xf32> -> vector<40x32xf32>
    %c0_15 = arith.constant 0 : index
    %c0_16 = arith.constant 0 : index
    %20 = vector.load %arg7[%c0_15, %c0_16] : memref<1x32xf32, #tpu.memory_space<vmem>>, vector<1x32xf32>
    %21 = vector.broadcast %20 : vector<1x32xf32> to vector<40x32xf32>
    %22 = arith.addf %19, %21 : vector<40x32xf32>
    %cst_17 = arith.constant 0.000000e+00 : f32
    %23 = vector.broadcast %cst_17 : f32 to vector<40x32xf32>
    %24 = arith.maximumf %22, %23 : vector<40x32xf32>
    %25 = arith.truncf %24 : vector<40x32xf32> to vector<40x32xbf16>
    %c0_18 = arith.constant 0 : index
    %c0_19 = arith.constant 0 : index
    %26 = vector.load %arg8[%c0_18, %c0_19] : memref<32x9xbf16, #tpu.memory_space<vmem>>, vector<32x9xbf16>
    %cst_20 = arith.constant dense<0.000000e+00> : vector<40x9xf32>
    %27 = tpu.matmul %25, %26, %cst_20 {dimension_numbers = #tpu.dot_dimension_numbers<[1], [0], [0], [1], [0, 0, 1, 1], [], []>} : vector<40x32xbf16>, vector<32x9xbf16>, vector<40x9xf32> -> vector<40x9xf32>
    %c0_21 = arith.constant 0 : index
    %c0_22 = arith.constant 0 : index
    %28 = vector.load %arg9[%c0_21, %c0_22] : memref<1x9xf32, #tpu.memory_space<vmem>>, vector<1x9xf32>
    %29 = vector.broadcast %28 : vector<1x9xf32> to vector<40x9xf32>
    %30 = arith.addf %27, %29 : vector<40x9xf32>
    %c0_23 = arith.constant 0 : index
    %c0_24 = arith.constant 0 : index
    %31 = vector.load %arg10[%c0_23, %c0_24] : memref<40x9xf32, #tpu.memory_space<vmem>>, vector<40x9xf32>
    tpu.vector_store %arg10[%c0_23, %c0_24], %30 {strides = array<i32>} : memref<40x9xf32, #tpu.memory_space<vmem>>, vector<40x9xf32>,
    return
  }
  func.func @transform_0(%arg0: i32) -> (i32, i32) {
    %c0_i32 = arith.constant 0 : i32
    %c0_i32_0 = arith.constant 0 : i32
    return %arg0, %c0_i32 : i32, i32
  }
  func.func @transform_1(%arg0: i32) -> (i32, i32) {
    %c0_i32 = arith.constant 0 : i32
    %c0_i32_0 = arith.constant 0 : i32
    %c0_i32_1 = arith.constant 0 : i32
    return %c0_i32, %c0_i32_0 : i32, i32
  }
  func.func @transform_2(%arg0: i32) -> (i32, i32) {
    %c0_i32 = arith.constant 0 : i32
    %c0_i32_0 = arith.constant 0 : i32
    %c0_i32_1 = arith.constant 0 : i32
    return %c0_i32, %c0_i32_0 : i32, i32
  }
  func.func @transform_3(%arg0: i32) -> (i32, i32) {
    %c0_i32 = arith.constant 0 : i32
    %c0_i32_0 = arith.constant 0 : i32
    %c0_i32_1 = arith.constant 0 : i32
    return %c0_i32, %c0_i32_0 : i32, i32
  }
  func.func @transform_4(%arg0: i32) -> (i32, i32) {
    %c0_i32 = arith.constant 0 : i32
    %c0_i32_0 = arith.constant 0 : i32
    %c0_i32_1 = arith.constant 0 : i32
    return %c0_i32, %c0_i32_0 : i32, i32
  }
  func.func @transform_5(%arg0: i32) -> (i32, i32) {
    %c0_i32 = arith.constant 0 : i32
    %c0_i32_0 = arith.constant 0 : i32
    %c0_i32_1 = arith.constant 0 : i32
    return %c0_i32, %c0_i32_0 : i32, i32
  }
  func.func @transform_6(%arg0: i32) -> (i32, i32) {
    %c0_i32 = arith.constant 0 : i32
    %c0_i32_0 = arith.constant 0 : i32
    %c0_i32_1 = arith.constant 0 : i32
    return %c0_i32, %c0_i32_0 : i32, i32
  }
  func.func @transform_7(%arg0: i32) -> (i32, i32) {
    %c0_i32 = arith.constant 0 : i32
    %c0_i32_0 = arith.constant 0 : i32
    %c0_i32_1 = arith.constant 0 : i32
    return %c0_i32, %c0_i32_0 : i32, i32
  }
  func.func @transform_8(%arg0: i32) -> (i32, i32) {
    %c0_i32 = arith.constant 0 : i32
    %c0_i32_0 = arith.constant 0 : i32
    %c0_i32_1 = arith.constant 0 : i32
    return %c0_i32, %c0_i32_0 : i32, i32
  }
  func.func @transform_9(%arg0: i32) -> (i32, i32) {
    %c0_i32 = arith.constant 0 : i32
    %c0_i32_0 = arith.constant 0 : i32
    return %arg0, %c0_i32 : i32, i32
  }
}

</mosaic_0001>

<llo_original>
// kernel: observable_decoder_forward.1
$region0: #{observable_decoder_forward.1}
  #allocation0 [shape = 'u32[]', space=smem, size = 0x4, offset = 0x4, fixed_abs, tag = 'smem constant byte address 0x4 - core index']
  #allocation1 [shape = 'u32[144,128]{1,0:T(1,128)}', space=vmem, size = 0x12000, scoped, tag = 'internal scratch']
  %s0 = inlined_call_operand.vmem [shape: f32[66,32], index: 0, kind: input, shape index: {}]
  %s1 = inlined_call_operand.vmem [shape: bf16[32,32], index: 1, kind: input, shape index: {}]
  %s2 = inlined_call_operand.vmem [shape: f32[1,32], index: 2, kind: input, shape index: {}]
  %s3 = inlined_call_operand.vmem [shape: bf16[32,32], index: 3, kind: input, shape index: {}]
  %s4 = inlined_call_operand.vmem [shape: f32[1,32], index: 4, kind: input, shape index: {}]
  %s5 = inlined_call_operand.vmem [shape: bf16[32,32], index: 5, kind: input, shape index: {}]
  %s6 = inlined_call_operand.vmem [shape: f32[1,32], index: 6, kind: input, shape index: {}]
  %s7 = inlined_call_operand.vmem [shape: bf16[32,9], index: 7, kind: input, shape index: {}]
  %s8 = inlined_call_operand.vmem [shape: f32[1,9], index: 8, kind: input, shape index: {}]
  %s9 = inlined_call_operand.vmem [shape: f32[66,9], index: 9, kind: output, shape index: {}]
  %s10 = sld [smem:[#allocation0]]
  $region117: #{observable_decoder_forward.1} parent=0
    _
  %s12 = ssub.s32 1, %s10
  %s13 = scalar_select 0, %s12, %s10
  $region1: #{observable_decoder_forward.1} parent=0
    #allocation2 [shape = 'u8[40960]{0}', space=vmem, size = 0xa000, scoped, tag = 'output window, operand 0']
    loop: start=0, step=1, limit=4
    $region2: #{observable_decoder_forward.1} parent=1 // loop_pre_header
      _
    $region3: #{observable_decoder_forward.1} parent=1 // loop_header
      %s15 = sphi 0, %s19
      %p16 = scmp.ge.s32.totalorder %s15, 4
      %s25 = sphi 0, %s27
      %s28 = sphi 0, %s25
      %s29 = sphi 0, %s28
      %s45 = sphi 0, %s29
      %s49 = sphi 0, %s49
      %s51 = sphi 0, %s49
      %s52 = sphi 0, %s51
      %s66 = sphi 0, %s52
      %s70 = sphi 0, %s70
      %s72 = sphi 0, %s70
      %s73 = sphi 0, %s72
      %s87 = sphi 0, %s73
      %s91 = sphi 0, %s91
      %s93 = sphi 0, %s91
      %s94 = sphi 0, %s93
      %s108 = sphi 0, %s94
      %s112 = sphi 0, %s112
      %s114 = sphi 0, %s112
      %s115 = sphi 0, %s114
      %s129 = sphi 0, %s115
      %s133 = sphi 0, %s133
      %s135 = sphi 0, %s133
      %s136 = sphi 0, %s135
      %s150 = sphi 0, %s136
      %s154 = sphi 0, %s154
      %s156 = sphi 0, %s154
      %s157 = sphi 0, %s156
      %s171 = sphi 0, %s157
      %s175 = sphi 0, %s175
      %s177 = sphi 0, %s175
      %s178 = sphi 0, %s177
      %s192 = sphi 0, %s178
      %s196 = sphi 0, %s196
      %s198 = sphi 0, %s196
      %s199 = sphi 0, %s198
      %s213 = sphi 0, %s199
      %s219 = sphi 0, %s221
      %s222 = sphi 0, %s219
      %s223 = sphi 0, %s222
      %s239 = sphi 0, %s223
    $region4: #{observable_decoder_forward.1} parent=1 // loop_header_branch
      %18 = sbr.rel (%p16) target = $region8
    $region5: #{observable_decoder_forward.1} parent=1 // loop_body
      %s20 = ssub.s32 %s15, 1
      %s21 = ssub.s32 %s15, 2
      %s22 = sadd.s32 %s15, 1
      %s23 = ssub.s32 %s15, %s22
      %p24 = scmp.eq.s32.totalorder %s23, 0
      %s26 = sadd.s32 %s25, 1
      %s27 = scalar_select %p24, %s25, %s26
      %p30 = pneg %p24
      %p31 = scmp.eq.s32.totalorder %s15, 1
      %p32 = por %p30, %p31
      %p33 = scmp.ne.s32.totalorder %s25, %s28
      %p34 = scmp.eq.s32.totalorder %s15, 0
      %p35 = por %p33, %p34
      %p36 = scmp.ne.s32.totalorder %s25, %s28
      %p37 = scmp.eq.s32.totalorder %s20, 1
      %p38 = por %p36, %p37
      %p39 = scmp.ne.s32.totalorder %s28, %s29
      %p40 = scmp.eq.s32.totalorder %s20, 0
      %p41 = por %p39, %p40
      %p42 = scmp.ne.s32.totalorder %s28, %s29
      %p43 = scmp.eq.s32.totalorder %s21, 1
      %p44 = por %p42, %p43
      %p46 = scmp.ne.s32.totalorder %s29, %s45
      %p47 = scmp.eq.s32.totalorder %s21, 0
      %p48 = por %p46, %p47
      %s50 = sadd.s32 %s49, 1
      %p53 = scmp.eq.s32.totalorder %s15, 1
      %p54 = scmp.ne.s32.totalorder %s49, %s51
      %p55 = scmp.eq.s32.totalorder %s15, 0
      %p56 = por %p54, %p55
      %p57 = scmp.ne.s32.totalorder %s49, %s51
      %p58 = scmp.eq.s32.totalorder %s20, 1
      %p59 = por %p57, %p58
      %p60 = scmp.ne.s32.totalorder %s51, %s52
      %p61 = scmp.eq.s32.totalorder %s20, 0
      %p62 = por %p60, %p61
      %p63 = scmp.ne.s32.totalorder %s51, %s52
      %p64 = scmp.eq.s32.totalorder %s21, 1
      %p65 = por %p63, %p64
      %p67 = scmp.ne.s32.totalorder %s52, %s66
      %p68 = scmp.eq.s32.totalorder %s21, 0
      %p69 = por %p67, %p68
      %s71 = sadd.s32 %s70, 1
      %p74 = scmp.eq.s32.totalorder %s15, 1
      %p75 = scmp.ne.s32.totalorder %s70, %s72
      %p76 = scmp.eq.s32.totalorder %s15, 0
      %p77 = por %p75, %p76
      %p78 = scmp.ne.s32.totalorder %s70, %s72
      %p79 = scmp.eq.s32.totalorder %s20, 1
      %p80 = por %p78, %p79
      %p81 = scmp.ne.s32.totalorder %s72, %s73
      %p82 = scmp.eq.s32.totalorder %s20, 0
      %p83 = por %p81, %p82
      %p84 = scmp.ne.s32.totalorder %s72, %s73
      %p85 = scmp.eq.s32.totalorder %s21, 1
      %p86 = por %p84, %p85
      %p88 = scmp.ne.s32.totalorder %s73, %s87
      %p89 = scmp.eq.s32.totalorder %s21, 0
      %p90 = por %p88, %p89
      %s92 = sadd.s32 %s91, 1
      %p95 = scmp.eq.s32.totalorder %s15, 1
      %p96 = scmp.ne.s32.totalorder %s91, %s93
      %p97 = scmp.eq.s32.totalorder %s15, 0
      %p98 = por %p96, %p97
      %p99 = scmp.ne.s32.totalorder %s91, %s93
      %p100 = scmp.eq.s32.totalorder %s20, 1
      %p101 = por %p99, %p100
      %p102 = scmp.ne.s32.totalorder %s93, %s94
      %p103 = scmp.eq.s32.totalorder %s20, 0
      %p104 = por %p102, %p103
      %p105 = scmp.ne.s32.totalorder %s93, %s94
      %p106 = scmp.eq.s32.totalorder %s21, 1
      %p107 = por %p105, %p106
      %p109 = scmp.ne.s32.totalorder %s94, %s108
      %p110 = scmp.eq.s32.totalorder %s21, 0
      %p111 = por %p109, %p110
      %s113 = sadd.s32 %s112, 1
      %p116 = scmp.eq.s32.totalorder %s15, 1
      %p117 = scmp.ne.s32.totalorder %s112, %s114
      %p118 = scmp.eq.s32.totalorder %s15, 0
      %p119 = por %p117, %p118
      %p120 = scmp.ne.s32.totalorder %s112, %s114
      %p121 = scmp.eq.s32.totalorder %s20, 1
      %p122 = por %p120, %p121
      %p123 = scmp.ne.s32.totalorder %s114, %s115
      %p124 = scmp.eq.s32.totalorder %s20, 0
      %p125 = por %p123, %p124
      %p126 = scmp.ne.s32.totalorder %s114, %s115
      %p127 = scmp.eq.s32.totalorder %s21, 1
      %p128 = por %p126, %p127
      %p130 = scmp.ne.s32.totalorder %s115, %s129
      %p131 = scmp.eq.s32.totalorder %s21, 0
      %p132 = por %p130, %p131
      %s134 = sadd.s32 %s133, 1
      %p137 = scmp.eq.s32.totalorder %s15, 1
      %p138 = scmp.ne.s32.totalorder %s133, %s135
      %p139 = scmp.eq.s32.totalorder %s15, 0
      %p140 = por %p138, %p139
      %p141 = scmp.ne.s32.totalorder %s133, %s135
      %p142 = scmp.eq.s32.totalorder %s20, 1
      %p143 = por %p141, %p142
      %p144 = scmp.ne.s32.totalorder %s135, %s136
      %p145 = scmp.eq.s32.totalorder %s20, 0
      %p146 = por %p144, %p145
      %p147 = scmp.ne.s32.totalorder %s135, %s136
      %p148 = scmp.eq.s32.totalorder %s21, 1
      %p149 = por %p147, %p148
      %p151 = scmp.ne.s32.totalorder %s136, %s150
      %p152 = scmp.eq.s32.totalorder %s21, 0
      %p153 = por %p151, %p152
      %s155 = sadd.s32 %s154, 1
      %p158 = scmp.eq.s32.totalorder %s15, 1
      %p159 = scmp.ne.s32.totalorder %s154, %s156
      %p160 = scmp.eq.s32.totalorder %s15, 0
      %p161 = por %p159, %p160
      %p162 = scmp.ne.s32.totalorder %s154, %s156
      %p163 = scmp.eq.s32.totalorder %s20, 1
      %p164 = por %p162, %p163
      %p165 = scmp.ne.s32.totalorder %s156, %s157
      %p166 = scmp.eq.s32.totalorder %s20, 0
      %p167 = por %p165, %p166
      %p168 = scmp.ne.s32.totalorder %s156, %s157
      %p169 = scmp.eq.s32.totalorder %s21, 1
      %p170 = por %p168, %p169
      %p172 = scmp.ne.s32.totalorder %s157, %s171
      %p173 = scmp.eq.s32.totalorder %s21, 0
      %p174 = por %p172, %p173
      %s176 = sadd.s32 %s175, 1
      %p179 = scmp.eq.s32.totalorder %s15, 1
      %p180 = scmp.ne.s32.totalorder %s175, %s177
      %p181 = scmp.eq.s32.totalorder %s15, 0
      %p182 = por %p180, %p181
      %p183 = scmp.ne.s32.totalorder %s175, %s177
      %p184 = scmp.eq.s32.totalorder %s20, 1
      %p185 = por %p183, %p184
      %p186 = scmp.ne.s32.totalorder %s177, %s178
      %p187 = scmp.eq.s32.totalorder %s20, 0
      %p188 = por %p186, %p187
      %p189 = scmp.ne.s32.totalorder %s177, %s178
      %p190 = scmp.eq.s32.totalorder %s21, 1
      %p191 = por %p189, %p190
      %p193 = scmp.ne.s32.totalorder %s178, %s192
      %p194 = scmp.eq.s32.totalorder %s21, 0
      %p195 = por %p193, %p194
      %s197 = sadd.s32 %s196, 1
      %p200 = scmp.eq.s32.totalorder %s15, 1
      %p201 = scmp.ne.s32.totalorder %s196, %s198
      %p202 = scmp.eq.s32.totalorder %s15, 0
      %p203 = por %p201, %p202
      %p204 = scmp.ne.s32.totalorder %s196, %s198
      %p205 = scmp.eq.s32.totalorder %s20, 1
      %p206 = por %p204, %p205
      %p207 = scmp.ne.s32.totalorder %s198, %s199
      %p208 = scmp.eq.s32.totalorder %s20, 0
      %p209 = por %p207, %p208
      %p210 = scmp.ne.s32.totalorder %s198, %s199
      %p211 = scmp.eq.s32.totalorder %s21, 1
      %p212 = por %p210, %p211
      %p214 = scmp.ne.s32.totalorder %s199, %s213
      %p215 = scmp.eq.s32.totalorder %s21, 0
      %p216 = por %p214, %p215
      %s217 = ssub.s32 %s15, %s22
      %p218 = scmp.eq.s32.totalorder %s217, 0
      %s220 = sadd.s32 %s219, 1
      %s221 = scalar_select %p218, %s219, %s220
      %p224 = pneg %p218
      %p225 = scmp.eq.s32.totalorder %s15, 1
      %p226 = por %p224, %p225
      %p227 = scmp.ne.s32.totalorder %s219, %s222
      %p228 = scmp.eq.s32.totalorder %s15, 0
      %p229 = por %p227, %p228
      %p230 = scmp.ne.s32.totalorder %s219, %s222
      %p231 = scmp.eq.s32.totalorder %s20, 1
      %p232 = por %p230, %p231
      %p233 = scmp.ne.s32.totalorder %s222, %s223
      %p234 = scmp.eq.s32.totalorder %s20, 0
      %p235 = por %p233, %p234
      %p236 = scmp.ne.s32.totalorder %s222, %s223
      %p237 = scmp.eq.s32.totalorder %s21, 1
      %p238 = por %p236, %p237
      %p240 = scmp.ne.s32.totalorder %s223, %s239
      %p241 = scmp.eq.s32.totalorder %s21, 0
      %p242 = por %p240, %p241
      %p243 = scmp.le.s32.totalorder 1, %s15
      %p244 = scmp.lt.s32.totalorder %s15, 3
      %p245 = pnand %p243, %p244
      %p246 = pneg %p245
      // Predicated region
      $region9: #{observable_decoder_forward.1} parent=5 // pred_check
        _
      $region10: #{observable_decoder_forward.1} parent=5 // pred_check_branch
        %248 = sbr.rel (%p245) target = $region12
      $region11: #{observable_decoder_forward.1} parent=5 // pred_region
        %s249 = ssub.s32 %s15, 1
        // Predicated region
        $region13: #{observable_decoder_forward.1} parent=11 // pred_check
          %p250 = pneg %p62
        $region14: #{observable_decoder_forward.1} parent=11 // pred_check_branch
          %252 = sbr.rel (%p250) target = $region16
        $region15: #{observable_decoder_forward.1} parent=11 // pred_region
          _
        $region16: #{observable_decoder_forward.1} parent=11 // pred_fallthru
          _
        // Predicated region
        $region17: #{observable_decoder_forward.1} parent=11 // pred_check
          %p253 = pneg %p83
        $region18: #{observable_decoder_forward.1} parent=11 // pred_check_branch
          %255 = sbr.rel (%p253) target = $region20
        $region19: #{observable_decoder_forward.1} parent=11 // pred_region
          _
        $region20: #{observable_decoder_forward.1} parent=11 // pred_fallthru
          _
        // Predicated region
        $region21: #{observable_decoder_forward.1} parent=11 // pred_check
          %p256 = pneg %p104
        $region22: #{observable_decoder_forward.1} parent=11 // pred_check_branch
          %258 = sbr.rel (%p256) target = $region24
        $region23: #{observable_decoder_forward.1} parent=11 // pred_region
          _
        $region24: #{observable_decoder_forward.1} parent=11 // pred_fallthru
          _
        // Predicated region
        $region25: #{observable_decoder_forward.1} parent=11 // pred_check
          %p259 = pneg %p125
        $region26: #{observable_decoder_forward.1} parent=11 // pred_check_branch
          %261 = sbr.rel (%p259) target = $region28
        $region27: #{observable_decoder_forward.1} parent=11 // pred_region
          _
        $region28: #{observable_decoder_forward.1} parent=11 // pred_fallthru
          _
        // Predicated region
        $region29: #{observable_decoder_forward.1} parent=11 // pred_check
          %p262 = pneg %p146
        $region30: #{observable_decoder_forward.1} parent=11 // pred_check_branch
          %264 = sbr.rel (%p262) target = $region32
        $region31: #{observable_decoder_forward.1} parent=11 // pred_region
          _
        $region32: #{observable_decoder_forward.1} parent=11 // pred_fallthru
          _
        // Predicated region
        $region33: #{observable_decoder_forward.1} parent=11 // pred_check
          %p265 = pneg %p167
        $region34: #{observable_decoder_forward.1} parent=11 // pred_check_branch
          %267 = sbr.rel (%p265) target = $region36
        $region35: #{observable_decoder_forward.1} parent=11 // pred_region
          _
        $region36: #{observable_decoder_forward.1} parent=11 // pred_fallthru
          _
        // Predicated region
        $region37: #{observable_decoder_forward.1} parent=11 // pred_check
          %p268 = pneg %p188
        $region38: #{observable_decoder_forward.1} parent=11 // pred_check_branch
          %270 = sbr.rel (%p268) target = $region40
        $region39: #{observable_decoder_forward.1} parent=11 // pred_region
          _
        $region40: #{observable_decoder_forward.1} parent=11 // pred_fallthru
          _
        // Predicated region
        $region41: #{observable_decoder_forward.1} parent=11 // pred_check
          %p271 = pneg %p209
        $region42: #{observable_decoder_forward.1} parent=11 // pred_check_branch
          %273 = sbr.rel (%p271) target = $region44
        $region43: #{observable_decoder_forward.1} parent=11 // pred_region
          _
        $region44: #{observable_decoder_forward.1} parent=11 // pred_fallthru
          _
      $region12: #{observable_decoder_forward.1} parent=5 // pred_fallthru
        _
      %p274 = scmp.lt.s32.totalorder %s15, 2
      // Predicated region
      $region45: #{observable_decoder_forward.1} parent=5 // pred_check
        %p275 = pneg %p274
      $region46: #{observable_decoder_forward.1} parent=5 // pred_check_branch
        %277 = sbr.rel (%p275) target = $region48
      $region47: #{observable_decoder_forward.1} parent=5 // pred_region
        // Predicated region
        $region49: #{observable_decoder_forward.1} parent=47 // pred_check
          %p278 = pneg %p35
        $region50: #{observable_decoder_forward.1} parent=47 // pred_check_branch
          %280 = sbr.rel (%p278) target = $region52
        $region51: #{observable_decoder_forward.1} parent=47 // pred_region
          %s281 = smul.u32 5, %s15
          %s282 = ssub.s32 9, %s281
          %p283 = scmp.lt.s32.totalorder %s282, 5
          %s284 = scalar_select %p283, %s282, 5
          %s285 = smul.u32 128, %s284
          %p286 = scmp.lt.s32.totalorder %s281, 8
          %s287 = scalar_select %p286, %s281, 8
          %s288 = smul.addr %s287, 8
          %s289 = scalar_lea.vmem %s0, %s288
          %s290 = smul.u32 5, %s15
          %s291 = ssub.s32 9, %s290
          %p292 = scmp.lt.s32.totalorder %s291, 5
          %s293 = scalar_select %p292, %s291, 5
          %s294 = smul.u32 128, %s293
        $region52: #{observable_decoder_forward.1} parent=47 // pred_fallthru
          _
      $region48: #{observable_decoder_forward.1} parent=5 // pred_fallthru
        _
      %p295 = scmp.le.s32.totalorder 1, %s15
      %p296 = scmp.lt.s32.totalorder %s15, 3
      %p297 = pnand %p295, %p296
      %p298 = pneg %p297
      // Predicated region
      $region53: #{observable_decoder_forward.1} parent=5 // pred_check
        _
      $region54: #{observable_decoder_forward.1} parent=5 // pred_check_branch
        %300 = sbr.rel (%p297) target = $region56
      $region55: #{observable_decoder_forward.1} parent=5 // pred_region
        %s301 = ssub.s32 %s15, 1
        %s302 = smul.u32 5, %s20
        %s303 = ssub.s32 9, %s302
        %p304 = scmp.lt.s32.totalorder %s303, 5
        %s305 = scalar_select %p304, %s303, 5
        %s306 = smul.u32 128, %s305
        %p307 = scmp.lt.s32.totalorder %s302, 8
        %s308 = scalar_select %p307, %s302, 8
        %s309 = smul.addr %s308, 8
        %s310 = scalar_lea.vmem %s0, %s309
        %p311 = pneg %p41
        %p312 = pneg %p38
        %p313 = pneg %p62
        %p314 = pneg %p59
        %p315 = pneg %p83
        %p316 = pneg %p80
        %p317 = pneg %p104
        %p318 = pneg %p101
        %p319 = pneg %p125
        %p320 = pneg %p122
        %p321 = pneg %p146
        %p322 = pneg %p143
        %p323 = pneg %p167
        %p324 = pneg %p164
        %p325 = pneg %p188
        %p326 = pneg %p185
        %p327 = pneg %p209
        %p328 = pneg %p206
        %p329 = pneg %p235
        %p330 = pneg %p232
        %s331 = sand.u32 %s222, 1
        %s332 = sand.u32 %s222, 1
        %s333 = smul.addr %s332, 40
        %s334 = scalar_lea.vmem [#allocation2], %s333
        %s335 = smul.u32 5, %s20
        %s336 = ssub.s32 9, %s335
        %p337 = scmp.lt.s32.totalorder %s336, 5
        %s338 = scalar_select %p337, %s336, 5
        %s339 = smul.u32 128, %s338
        %p340 = scmp.lt.s32.totalorder %s335, 8
        %s341 = scalar_select %p340, %s335, 8
        %s342 = smul.addr %s341, 8
        %s343 = scalar_lea.vmem %s0, %s342
        %s344 = smul.u32 5, %s20
        %s345 = ssub.s32 9, %s344
        %p346 = scmp.lt.s32.totalorder %s345, 5
        %s347 = scalar_select %p346, %s345, 5
        %s348 = smul.u32 128, %s347
        %s349 = smul.u32 5, %s20
        %s350 = ssub.s32 9, %s349
        %p351 = scmp.lt.s32.totalorder %s350, 5
        %s352 = scalar_select %p351, %s350, 5
        %s353 = smul.u32 128, %s352
        %v355 = vld [vmem:[%s343] sm:$0xff]
        %v356 = vld [vmem:[%s343 + $0x8] sm:$0xff]
        %v357 = vld [vmem:[%s343 + $0x10] sm:$0xff]
        %v358 = vld [vmem:[%s343 + $0x18] sm:$0xff]
        %v359 = vld [vmem:[%s343 + $0x20] sm:$0xff]
        %v360 = vpack.c.bf16 %v356, %v355
        %v361 = vpack.c.bf16 %v358, %v357
        %v362 = vpack.c.bf16 %v359, %v359
        %v363 = vld [vmem:[%s1] sm:$0xf]
        %v364 = vld [vmem:[%s1 + $0x4] sm:$0xf]
        %v365 = vld [vmem:[%s1 + $0x8] sm:$0xf]
        %v366 = vld [vmem:[%s1 + $0xc] sm:$0xf]
        %v367 = vld [vmem:[%s2] sm:$0x1]
        %v369 = vlaneseq
        %v370 = vshrl.u32 %v369, 7
        %v371 = vsub.s32 0, %v370
        %v372 = vrot.slane %v367, %v371
        %v378 = vunpack.c.l.b16 %v363
        %v379 = vunpack.c.l.b16 %v364
        %v380 = vunpack.c.l.b16 %v365
        %v381 = vunpack.c.l.b16 %v366
        %v382 = vpack.c.b16 %v379, %v378
        %v383 = vpack.c.b16 %v381, %v380
        %vm386 = vcmask 261120
        %v388 = vsel %vm386, %v360, 0
        %v391 = vsel %vm386, %v361, 0
        %v394 = vsel %vm386, %v362, 0
        %396 = vmatprep.subr.bf16.mxu0 0
        %397 = vmatpush1.bf16.msra.mxu0 %v382
        %398 = vmatprep.subr.bf16.mxu0 0
        %399 = vmatpush1.bf16.msra.mxu0 %v383
        %400 = vmatprep.subr.bf16.mxu0 0
        %401 = vmatpush1.bf16.msra.mxu0 0
        %402 = vmatprep.subr.bf16.mxu0 0
        %403 = vmatpush1.bf16.msra.mxu0 0
        %404 = vmatprep.subr.bf16.mxu0 0
        %405 = vmatpush1.bf16.msra.mxu0 0
        %406 = vmatprep.subr.bf16.mxu0 0
        %407 = vmatpush1.bf16.msra.mxu0 0
        %408 = vmatprep.subr.bf16.mxu0 0
        %409 = vmatpush1.bf16.msra.mxu0 0
        %410 = vmatprep.subr.bf16.mxu0 0
        %411 = vmatpush1.bf16.msra.mxu0 0
        %412 = vmatprep.subr.bf16.mxu0 0
        %413 = vmatpush1.bf16.msra.mxu0 0
        %414 = vmatprep.subr.bf16.mxu0 0
        %415 = vmatpush1.bf16.msra.mxu0 0
        %416 = vmatprep.subr.bf16.mxu0 0
        %417 = vmatpush1.bf16.msra.mxu0 0
        %418 = vmatprep.subr.bf16.mxu0 0
        %419 = vmatpush1.bf16.msra.mxu0 0
        %420 = vmatprep.subr.bf16.mxu0 0
        %421 = vmatpush1.bf16.msra.mxu0 0
        %422 = vmatprep.subr.bf16.mxu0 0
        %423 = vmatpush1.bf16.msra.mxu0 0
        %424 = vmatprep.subr.bf16.mxu0 0
        %425 = vmatpush1.bf16.msra.mxu0 0
        %426 = vmatprep.subr.bf16.mxu0 0
        %427 = vmatpush1.bf16.msra.mxu0 0
        %428 = vmatprep.mubr.bf16.mxu0 0
        %429 = vmatmul.mubr.bf16.gmra.mrb[0].mxu0 %v388
        %v430 = vpop.f32.mrb[0].mxu0
        %v431 = vadd.f32 %v372, %v430
        %v432 = vpop.f32.mrb[0].mxu0
        %v433 = vpop.f32.mrb[0].mxu0
        %v434 = vadd.f32 %v372, %v433
        %v435 = vpop.f32.mrb[0].mxu0
        %436 = vmatprep.mubr.bf16.mxu0 0
        %437 = vmatmul.mubr.bf16.gmra.mrb[0].mxu0 %v391
        %v438 = vpop.f32.mrb[0].mxu0
        %v439 = vadd.f32 %v372, %v438
        %v440 = vpop.f32.mrb[0].mxu0
        %v441 = vpop.f32.mrb[0].mxu0
        %v442 = vadd.f32 %v372, %v441
        %v443 = vpop.f32.mrb[0].mxu0
        %444 = vmatprep.mubr.bf16.mxu0 0
        %445 = vmatmul.mubr.bf16.gmra.mrb[0].mxu0 %v394
        %v446 = vpop.f32.mrb[0].mxu0
        %v447 = vadd.f32 %v372, %v446
        %v448 = vpop.f32.mrb[0].mxu0
        %v449 = vpop.f32.mrb[0].mxu0
        %v450 = vpop.f32.mrb[0].mxu0
        %451 = vdwg.mxu0
        %v452 = vmax.f32 %v431, 0.0
        %v453 = vmax.f32 %v434, 0.0
        %v454 = vmax.f32 %v439, 0.0
        %v455 = vmax.f32 %v442, 0.0
        %v456 = vmax.f32 %v447, 0.0
        %v457 = vpack.c.bf16 %v453, %v452
        %v458 = vpack.c.bf16 %v455, %v454
        %v459 = vpack.c.bf16 %v456, %v456
        %v460 = vld [vmem:[%s3] sm:$0xf]
        %v461 = vld [vmem:[%s3 + $0x4] sm:$0xf]
        %v462 = vld [vmem:[%s3 + $0x8] sm:$0xf]
        %v463 = vld [vmem:[%s3 + $0xc] sm:$0xf]
        %v464 = vld [vmem:[%s4] sm:$0x1]
        %v466 = vlaneseq
        %v467 = vshrl.u32 %v466, 7
        %v468 = vsub.s32 0, %v467
        %v469 = vrot.slane %v464, %v468
        %v475 = vunpack.c.l.b16 %v460
        %v476 = vunpack.c.l.b16 %v461
        %v477 = vunpack.c.l.b16 %v462
        %v478 = vunpack.c.l.b16 %v463
        %v479 = vpack.c.b16 %v476, %v475
        %v480 = vpack.c.b16 %v478, %v477
        %v484 = vsel %vm386, %v457, 0
        %v487 = vsel %vm386, %v458, 0
        %v490 = vsel %vm386, %v459, 0
        %492 = vmatprep.subr.bf16.mxu0 0
        %493 = vmatpush1.bf16.msra.mxu0 %v479
        %494 = vmatprep.subr.bf16.mxu0 0
        %495 = vmatpush1.bf16.msra.mxu0 %v480
        %496 = vmatprep.subr.bf16.mxu0 0
        %497 = vmatpush1.bf16.msra.mxu0 0
        %498 = vmatprep.subr.bf16.mxu0 0
        %499 = vmatpush1.bf16.msra.mxu0 0
        %500 = vmatprep.subr.bf16.mxu0 0
        %501 = vmatpush1.bf16.msra.mxu0 0
        %502 = vmatprep.subr.bf16.mxu0 0
        %503 = vmatpush1.bf16.msra.mxu0 0
        %504 = vmatprep.subr.bf16.mxu0 0
        %505 = vmatpush1.bf16.msra.mxu0 0
        %506 = vmatprep.subr.bf16.mxu0 0
        %507 = vmatpush1.bf16.msra.mxu0 0
        %508 = vmatprep.subr.bf16.mxu0 0
        %509 = vmatpush1.bf16.msra.mxu0 0
        %510 = vmatprep.subr.bf16.mxu0 0
        %511 = vmatpush1.bf16.msra.mxu0 0
        %512 = vmatprep.subr.bf16.mxu0 0
        %513 = vmatpush1.bf16.msra.mxu0 0
        %514 = vmatprep.subr.bf16.mxu0 0
        %515 = vmatpush1.bf16.msra.mxu0 0
        %516 = vmatprep.subr.bf16.mxu0 0
        %517 = vmatpush1.bf16.msra.mxu0 0
        %518 = vmatprep.subr.bf16.mxu0 0
        %519 = vmatpush1.bf16.msra.mxu0 0
        %520 = vmatprep.subr.bf16.mxu0 0
        %521 = vmatpush1.bf16.msra.mxu0 0
        %522 = vmatprep.subr.bf16.mxu0 0
        %523 = vmatpush1.bf16.msra.mxu0 0
        %524 = vmatprep.mubr.bf16.mxu0 0
        %525 = vmatmul.mubr.bf16.gmra.mrb[0].mxu0 %v484
        %v526 = vpop.f32.mrb[0].mxu0
        %v527 = vadd.f32 %v469, %v526
        %v528 = vpop.f32.mrb[0].mxu0
        %v529 = vpop.f32.mrb[0].mxu0
        %v530 = vadd.f32 %v469, %v529
        %v531 = vpop.f32.mrb[0].mxu0
        %532 = vmatprep.mubr.bf16.mxu0 0
        %533 = vmatmul.mubr.bf16.gmra.mrb[0].mxu0 %v487
        %v534 = vpop.f32.mrb[0].mxu0
        %v535 = vadd.f32 %v469, %v534
        %v536 = vpop.f32.mrb[0].mxu0
        %v537 = vpop.f32.mrb[0].mxu0
        %v538 = vadd.f32 %v469, %v537
        %v539 = vpop.f32.mrb[0].mxu0
        %540 = vmatprep.mubr.bf16.mxu0 0
        %541 = vmatmul.mubr.bf16.gmra.mrb[0].mxu0 %v490
        %v542 = vpop.f32.mrb[0].mxu0
        %v543 = vadd.f32 %v469, %v542
        %v544 = vpop.f32.mrb[0].mxu0
        %v545 = vpop.f32.mrb[0].mxu0
        %v546 = vpop.f32.mrb[0].mxu0
        %547 = vdwg.mxu0
        %v548 = vmax.f32 %v527, 0.0
        %v549 = vmax.f32 %v530, 0.0
        %v550 = vmax.f32 %v535, 0.0
        %v551 = vmax.f32 %v538, 0.0
        %v552 = vmax.f32 %v543, 0.0
        %v553 = vpack.c.bf16 %v549, %v548
        %v554 = vpack.c.bf16 %v551, %v550
        %v555 = vpack.c.bf16 %v552, %v552
        %v556 = vld [vmem:[%s5] sm:$0xf]
        %v557 = vld [vmem:[%s5 + $0x4] sm:$0xf]
        %v558 = vld [vmem:[%s5 + $0x8] sm:$0xf]
        %v559 = vld [vmem:[%s5 + $0xc] sm:$0xf]
        %v560 = vld [vmem:[%s6] sm:$0x1]
        %v562 = vlaneseq
        %v563 = vshrl.u32 %v562, 7
        %v564 = vsub.s32 0, %v563
        %v565 = vrot.slane %v560, %v564
        %v571 = vunpack.c.l.b16 %v556
        %v572 = vunpack.c.l.b16 %v557
        %v573 = vunpack.c.l.b16 %v558
        %v574 = vunpack.c.l.b16 %v559
        %v575 = vpack.c.b16 %v572, %v571
        %v576 = vpack.c.b16 %v574, %v573
        %v580 = vsel %vm386, %v553, 0
        %v583 = vsel %vm386, %v554, 0
        %v586 = vsel %vm386, %v555, 0
        %588 = vmatprep.subr.bf16.mxu0 0
        %589 = vmatpush1.bf16.msra.mxu0 %v575
        %590 = vmatprep.subr.bf16.mxu0 0
        %591 = vmatpush1.bf16.msra.mxu0 %v576
        %592 = vmatprep.subr.bf16.mxu0 0
        %593 = vmatpush1.bf16.msra.mxu0 0
        %594 = vmatprep.subr.bf16.mxu0 0
        %595 = vmatpush1.bf16.msra.mxu0 0
        %596 = vmatprep.subr.bf16.mxu0 0
        %597 = vmatpush1.bf16.msra.mxu0 0
        %598 = vmatprep.subr.bf16.mxu0 0
        %599 = vmatpush1.bf16.msra.mxu0 0
        %600 = vmatprep.subr.bf16.mxu0 0
        %601 = vmatpush1.bf16.msra.mxu0 0
        %602 = vmatprep.subr.bf16.mxu0 0
        %603 = vmatpush1.bf16.msra.mxu0 0
        %604 = vmatprep.subr.bf16.mxu0 0
        %605 = vmatpush1.bf16.msra.mxu0 0
        %606 = vmatprep.subr.bf16.mxu0 0
        %607 = vmatpush1.bf16.msra.mxu0 0
        %608 = vmatprep.subr.bf16.mxu0 0
        %609 = vmatpush1.bf16.msra.mxu0 0
        %610 = vmatprep.subr.bf16.mxu0 0
        %611 = vmatpush1.bf16.msra.mxu0 0
        %612 = vmatprep.subr.bf16.mxu0 0
        %613 = vmatpush1.bf16.msra.mxu0 0
        %614 = vmatprep.subr.bf16.mxu0 0
        %615 = vmatpush1.bf16.msra.mxu0 0
        %616 = vmatprep.subr.bf16.mxu0 0
        %617 = vmatpush1.bf16.msra.mxu0 0
        %618 = vmatprep.subr.bf16.mxu0 0
        %619 = vmatpush1.bf16.msra.mxu0 0
        %620 = vmatprep.mubr.bf16.mxu0 0
        %621 = vmatmul.mubr.bf16.gmra.mrb[0].mxu0 %v580
        %v622 = vpop.f32.mrb[0].mxu0
        %v623 = vadd.f32 %v565, %v622
        %v624 = vpop.f32.mrb[0].mxu0
        %v625 = vpop.f32.mrb[0].mxu0
        %v626 = vadd.f32 %v565, %v625
        %v627 = vpop.f32.mrb[0].mxu0
        %628 = vmatprep.mubr.bf16.mxu0 0
        %629 = vmatmul.mubr.bf16.gmra.mrb[0].mxu0 %v583
        %v630 = vpop.f32.mrb[0].mxu0
        %v631 = vadd.f32 %v565, %v630
        %v632 = vpop.f32.mrb[0].mxu0
        %v633 = vpop.f32.mrb[0].mxu0
        %v634 = vadd.f32 %v565, %v633
        %v635 = vpop.f32.mrb[0].mxu0
        %636 = vmatprep.mubr.bf16.mxu0 0
        %637 = vmatmul.mubr.bf16.gmra.mrb[0].mxu0 %v586
        %v638 = vpop.f32.mrb[0].mxu0
        %v639 = vadd.f32 %v565, %v638
        %v640 = vpop.f32.mrb[0].mxu0
        %v641 = vpop.f32.mrb[0].mxu0
        %v642 = vpop.f32.mrb[0].mxu0
        %643 = vdwg.mxu0
        %v644 = vmax.f32 %v623, 0.0
        %v645 = vmax.f32 %v626, 0.0
        %v646 = vmax.f32 %v631, 0.0
        %v647 = vmax.f32 %v634, 0.0
        %v648 = vmax.f32 %v639, 0.0
        %v649 = vpack.c.bf16 %v645, %v644
        %v650 = vpack.c.bf16 %v647, %v646
        %v651 = vpack.c.bf16 %v648, %v648
        %v652 = vld [vmem:[%s7] sm:$0xf]
        %v653 = vld [vmem:[%s7 + $0x4] sm:$0xf]
        %v654 = vld [vmem:[%s7 + $0x8] sm:$0xf]
        %v655 = vld [vmem:[%s7 + $0xc] sm:$0xf]
        %v656 = vld [vmem:[%s8] sm:$0x1]
        %v658 = vlaneseq
        %v659 = vshrl.u32 %v658, 7
        %v660 = vsub.s32 0, %v659
        %v661 = vrot.slane %v656, %v660
        %v667 = vunpack.c.l.b16 %v652
        %v668 = vunpack.c.l.b16 %v653
        %v669 = vunpack.c.l.b16 %v654
        %v670 = vunpack.c.l.b16 %v655
        %v671 = vpack.c.b16 %v668, %v667
        %v672 = vpack.c.b16 %v670, %v669
        %v676 = vsel %vm386, %v649, 0
        %v679 = vsel %vm386, %v650, 0
        %v682 = vsel %vm386, %v651, 0
        %684 = vmatprep.subr.bf16.mxu0 0
        %685 = vmatpush1.bf16.msra.mxu0 %v671
        %686 = vmatprep.subr.bf16.mxu0 0
        %687 = vmatpush1.bf16.msra.mxu0 %v672
        %688 = vmatprep.subr.bf16.mxu0 0
        %689 = vmatpush1.bf16.msra.mxu0 0
        %690 = vmatprep.subr.bf16.mxu0 0
        %691 = vmatpush1.bf16.msra.mxu0 0
        %692 = vmatprep.subr.bf16.mxu0 0
        %693 = vmatpush1.bf16.msra.mxu0 0
        %694 = vmatprep.subr.bf16.mxu0 0
        %695 = vmatpush1.bf16.msra.mxu0 0
        %696 = vmatprep.subr.bf16.mxu0 0
        %697 = vmatpush1.bf16.msra.mxu0 0
        %698 = vmatprep.subr.bf16.mxu0 0
        %699 = vmatpush1.bf16.msra.mxu0 0
        %700 = vmatprep.subr.bf16.mxu0 0
        %701 = vmatpush1.bf16.msra.mxu0 0
        %702 = vmatprep.subr.bf16.mxu0 0
        %703 = vmatpush1.bf16.msra.mxu0 0
        %704 = vmatprep.subr.bf16.mxu0 0
        %705 = vmatpush1.bf16.msra.mxu0 0
        %706 = vmatprep.subr.bf16.mxu0 0
        %707 = vmatpush1.bf16.msra.mxu0 0
        %708 = vmatprep.subr.bf16.mxu0 0
        %709 = vmatpush1.bf16.msra.mxu0 0
        %710 = vmatprep.subr.bf16.mxu0 0
        %711 = vmatpush1.bf16.msra.mxu0 0
        %712 = vmatprep.subr.bf16.mxu0 0
        %713 = vmatpush1.bf16.msra.mxu0 0
        %714 = vmatprep.subr.bf16.mxu0 0
        %715 = vmatpush1.bf16.msra.mxu0 0
        %716 = vmatprep.mubr.bf16.mxu0 0
        %717 = vmatmul.mubr.bf16.gmra.mrb[0].mxu0 %v676
        %v718 = vpop.f32.mrb[0].mxu0
        %v719 = vadd.f32 %v661, %v718
        %v720 = vpop.f32.mrb[0].mxu0
        %v721 = vpop.f32.mrb[0].mxu0
        %v722 = vadd.f32 %v661, %v721
        %v723 = vpop.f32.mrb[0].mxu0
        %724 = vmatprep.mubr.bf16.mxu0 0
        %725 = vmatmul.mubr.bf16.gmra.mrb[0].mxu0 %v679
        %v726 = vpop.f32.mrb[0].mxu0
        %v727 = vadd.f32 %v661, %v726
        %v728 = vpop.f32.mrb[0].mxu0
        %v729 = vpop.f32.mrb[0].mxu0
        %v730 = vadd.f32 %v661, %v729
        %v731 = vpop.f32.mrb[0].mxu0
        %732 = vmatprep.mubr.bf16.mxu0 0
        %733 = vmatmul.mubr.bf16.gmra.mrb[0].mxu0 %v682
        %v734 = vpop.f32.mrb[0].mxu0
        %v735 = vadd.f32 %v661, %v734
        %v736 = vpop.f32.mrb[0].mxu0
        %v737 = vpop.f32.mrb[0].mxu0
        %v738 = vpop.f32.mrb[0].mxu0
        %739 = vdwg.mxu0
        %vm740 = vcmask 72704
        %741 = vst.msk [vmem:[%s334] sm:$0xff] %vm740, %v719
        %742 = vst.msk [vmem:[%s334 + $0x8] sm:$0xff] %vm740, %v722
        %743 = vst.msk [vmem:[%s334 + $0x10] sm:$0xff] %vm740, %v727
        %744 = vst.msk [vmem:[%s334 + $0x18] sm:$0xff] %vm740, %v730
        %745 = vst.msk [vmem:[%s334 + $0x20] sm:$0xff] %vm740, %v735
        %s746 = sand.u32 %s222, 1
        %s747 = sand.u32 %s222, 1
        %s748 = smul.addr %s747, 40
        %s749 = scalar_lea.vmem [#allocation2], %s748
        // Predicated region
        $region57: #{observable_decoder_forward.1} parent=55 // pred_check
          %p750 = pneg %p232
        $region58: #{observable_decoder_forward.1} parent=55 // pred_check_branch
          %752 = sbr.rel (%p750) target = $region60
        $region59: #{observable_decoder_forward.1} parent=55 // pred_region
          %s753 = smul.u32 5, %s20
          %s754 = ssub.s32 9, %s753
          %p755 = scmp.lt.s32.totalorder %s754, 5
          %s756 = scalar_select %p755, %s754, 5
          %s757 = smul.u32 128, %s756
          %p758 = scmp.ne.s32.totalorder 0, %s757
          %s759 = smul.addr %s753, 8
          %s760 = scalar_lea.vmem %s9, %s759
          // Predicated region
          $region61: #{observable_decoder_forward.1} parent=59 // pred_check
            %p761 = pneg %p758
          $region62: #{observable_decoder_forward.1} parent=59 // pred_check_branch
            %763 = sbr.rel (%p761) target = $region64
          $region63: #{observable_decoder_forward.1} parent=59 // pred_region
            // Predicated region
            $region65: #{observable_decoder_forward.1} parent=63 // pred_check
              _
            $region66: #{observable_decoder_forward.1} parent=63 // pred_check_branch
              %765 = sbr.rel (0) target = $region68
            $region67: #{observable_decoder_forward.1} parent=63 // pred_region
              // Predicated region
              $region87: #{observable_decoder_forward.1} parent=67 // pred_check
                _
              $region88: #{observable_decoder_forward.1} parent=67 // pred_check_branch
                %823 = sbr.rel (0) target = $region90
              $region89: #{observable_decoder_forward.1} parent=67 // pred_region
                %s824 = sdiv.u32.pop %s756, 5
                %s825 = srem.u32.pop %s756, 5
                // While loop
                $region91: #{observable_decoder_forward.1} parent=89 // loop_pre_header
                  _
                $region92: #{observable_decoder_forward.1} parent=89 // loop_header
                  %s827 = sphi 0, %s829
                  %p828 = scmp.ge.s32.totalorder %s827, %s824
                  %s832 = sphi 0, %s847
                  %s833 = sphi %s749, %s850
                  %s834 = sphi %s760, %s851
                $region93: #{observable_decoder_forward.1} parent=89 // loop_header_branch
                  %831 = sbr.rel (%p828) target = $region97
                $region94: #{observable_decoder_forward.1} parent=89 // loop_body
                  %v835 = vld [vmem:[%s833] sm:$0xff]
                  %836 = vst [vmem:[%s834] sm:$0xff] %v835
                  %v837 = vld [vmem:[%s833 + $0x8] sm:$0xff]
                  %838 = vst [vmem:[%s834 + $0x8] sm:$0xff] %v837
                  %v839 = vld [vmem:[%s833 + $0x10] sm:$0xff]
                  %840 = vst [vmem:[%s834 + $0x10] sm:$0xff] %v839
                  %v841 = vld [vmem:[%s833 + $0x18] sm:$0xff]
                  %842 = vst [vmem:[%s834 + $0x18] sm:$0xff] %v841
                  %v843 = vld [vmem:[%s833 + $0x20] sm:$0xff]
                  %844 = vst [vmem:[%s834 + $0x20] sm:$0xff] %v843
                  %s845 = sadd.s32 1, %s832
                  %p846 = scmp.ge.s32.totalorder %s845, %s824
                  %s847 = scalar_select %p846, 0, %s845
                  %s848 = smul.u32 %s847, 40
                  %s849 = smul.u32 %s847, 40
                  %s850 = scalar_lea.vmem %s749, %s848 [#allocation2]
                  %s851 = scalar_lea.vmem %s760, %s849
                $region95: #{observable_decoder_forward.1} parent=89 // loop_footer
                  %s829 = sadd.s32 %s827, 1
                $region96: #{observable_decoder_forward.1} parent=89 // loop_footer_branch
                  %826 = sbr.rel target = $region92
                $region97: #{observable_decoder_forward.1} parent=89 // loop_exit
                  _
                %s852 = sdiv.u32.pop %s756, 5
                %s853 = srem.u32.pop %s756, 5
                %s854 = smul.u32 %s852, 5
                %s855 = smul.u32 8, %s854
                %s856 = scalar_lea.vmem %s749, %s855 [#allocation2]
                %s857 = smul.u32 8, %s854
                %s858 = scalar_lea.vmem %s760, %s857
                // While loop
                $region98: #{observable_decoder_forward.1} parent=89 // loop_pre_header
                  _
                $region99: #{observable_decoder_forward.1} parent=89 // loop_header
                  %s860 = sphi 0, %s862
                  %p861 = scmp.ge.s32.totalorder %s860, %s853
                  %s865 = sphi 0, %s872
                  %s866 = sphi %s856, %s875
                  %s867 = sphi %s858, %s876
                $region100: #{observable_decoder_forward.1} parent=89 // loop_header_branch
                  %864 = sbr.rel (%p861) target = $region104
                $region101: #{observable_decoder_forward.1} parent=89 // loop_body
                  %v868 = vld [vmem:[%s866] sm:$0xff]
                  %869 = vst [vmem:[%s867] sm:$0xff] %v868
                  %s870 = sadd.s32 1, %s865
                  %p871 = scmp.ge.s32.totalorder %s870, %s853
                  %s872 = scalar_select %p871, 0, %s870
                  %s873 = smul.u32 %s872, 8
                  %s874 = smul.u32 %s872, 8
                  %s875 = scalar_lea.vmem %s856, %s873 [#allocation2]
                  %s876 = scalar_lea.vmem %s858, %s874
                $region102: #{observable_decoder_forward.1} parent=89 // loop_footer
                  %s862 = sadd.s32 %s860, 1
                $region103: #{observable_decoder_forward.1} parent=89 // loop_footer_branch
                  %859 = sbr.rel target = $region99
                $region104: #{observable_decoder_forward.1} parent=89 // loop_exit
                  _
              $region90: #{observable_decoder_forward.1} parent=67 // pred_fallthru
                _
              // Predicated region
              $region105: #{observable_decoder_forward.1} parent=67 // pred_check
                _
              $region106: #{observable_decoder_forward.1} parent=67 // pred_check_branch
                %878 = sbr.rel target = $region108
              $region107: #{observable_decoder_forward.1} parent=67 // pred_region
                _
              $region108: #{observable_decoder_forward.1} parent=67 // pred_fallthru
                _
            $region68: #{observable_decoder_forward.1} parent=63 // pred_fallthru
              _
            // Predicated region
            $region69: #{observable_decoder_forward.1} parent=63 // pred_check
              _
            $region70: #{observable_decoder_forward.1} parent=63 // pred_check_branch
              %767 = sbr.rel target = $region72
            $region71: #{observable_decoder_forward.1} parent=63 // pred_region
              %s769 = sdiv.u32.pop %s756, 5
              %s770 = srem.u32.pop %s756, 5
              // While loop
              $region73: #{observable_decoder_forward.1} parent=71 // loop_pre_header
                _
              $region74: #{observable_decoder_forward.1} parent=71 // loop_header
                %s772 = sphi 0, %s774
                %p773 = scmp.ge.s32.totalorder %s772, %s769
                %s777 = sphi 0, %s792
                %s778 = sphi %s749, %s795
                %s779 = sphi %s760, %s796
              $region75: #{observable_decoder_forward.1} parent=71 // loop_header_branch
                %776 = sbr.rel (%p773) target = $region79
              $region76: #{observable_decoder_forward.1} parent=71 // loop_body
                %v780 = vld [vmem:[%s778] sm:$0xff]
                %781 = vst [vmem:[%s779] sm:$0xff] %v780
                %v782 = vld [vmem:[%s778 + $0x8] sm:$0xff]
                %783 = vst [vmem:[%s779 + $0x8] sm:$0xff] %v782
                %v784 = vld [vmem:[%s778 + $0x10] sm:$0xff]
                %785 = vst [vmem:[%s779 + $0x10] sm:$0xff] %v784
                %v786 = vld [vmem:[%s778 + $0x18] sm:$0xff]
                %787 = vst [vmem:[%s779 + $0x18] sm:$0xff] %v786
                %v788 = vld [vmem:[%s778 + $0x20] sm:$0xff]
                %789 = vst [vmem:[%s779 + $0x20] sm:$0xff] %v788
                %s790 = sadd.s32 1, %s777
                %p791 = scmp.ge.s32.totalorder %s790, %s769
                %s792 = scalar_select %p791, 0, %s790
                %s793 = smul.u32 %s792, 40
                %s794 = smul.u32 %s792, 40
                %s795 = scalar_lea.vmem %s749, %s793 [#allocation2]
                %s796 = scalar_lea.vmem %s760, %s794
              $region77: #{observable_decoder_forward.1} parent=71 // loop_footer
                %s774 = sadd.s32 %s772, 1
              $region78: #{observable_decoder_forward.1} parent=71 // loop_footer_branch
                %771 = sbr.rel target = $region74
              $region79: #{observable_decoder_forward.1} parent=71 // loop_exit
                _
              %s797 = sdiv.u32.pop %s756, 5
              %s798 = srem.u32.pop %s756, 5
              %s799 = smul.u32 %s797, 5
              %s800 = smul.u32 8, %s799
              %s801 = scalar_lea.vmem %s749, %s800 [#allocation2]
              %s802 = smul.u32 8, %s799
              %s803 = scalar_lea.vmem %s760, %s802
              // While loop
              $region80: #{observable_decoder_forward.1} parent=71 // loop_pre_header
                _
              $region81: #{observable_decoder_forward.1} parent=71 // loop_header
                %s805 = sphi 0, %s807
                %p806 = scmp.ge.s32.totalorder %s805, %s798
                %s810 = sphi 0, %s817
                %s811 = sphi %s801, %s820
                %s812 = sphi %s803, %s821
              $region82: #{observable_decoder_forward.1} parent=71 // loop_header_branch
                %809 = sbr.rel (%p806) target = $region86
              $region83: #{observable_decoder_forward.1} parent=71 // loop_body
                %v813 = vld [vmem:[%s811] sm:$0xff]
                %814 = vst [vmem:[%s812] sm:$0xff] %v813
                %s815 = sadd.s32 1, %s810
                %p816 = scmp.ge.s32.totalorder %s815, %s798
                %s817 = scalar_select %p816, 0, %s815
                %s818 = smul.u32 %s817, 8
                %s819 = smul.u32 %s817, 8
                %s820 = scalar_lea.vmem %s801, %s818 [#allocation2]
                %s821 = scalar_lea.vmem %s803, %s819
              $region84: #{observable_decoder_forward.1} parent=71 // loop_footer
                %s807 = sadd.s32 %s805, 1
              $region85: #{observable_decoder_forward.1} parent=71 // loop_footer_branch
                %804 = sbr.rel target = $region81
              $region86: #{observable_decoder_forward.1} parent=71 // loop_exit
                _
            $region72: #{observable_decoder_forward.1} parent=63 // pred_fallthru
              _
          $region64: #{observable_decoder_forward.1} parent=59 // pred_fallthru
            _
          %879 = vnop
        $region60: #{observable_decoder_forward.1} parent=55 // pred_fallthru
          _
      $region56: #{observable_decoder_forward.1} parent=5 // pred_fallthru
        _
      %p880 = scmp.le.s32.totalorder 2, %s15
      // Predicated region
      $region109: #{observable_decoder_forward.1} parent=5 // pred_check
        %p881 = pneg %p880
      $region110: #{observable_decoder_forward.1} parent=5 // pred_check_branch
        %883 = sbr.rel (%p881) target = $region112
      $region111: #{observable_decoder_forward.1} parent=5 // pred_region
        %s884 = ssub.s32 %s15, 2
        // Predicated region
        $region113: #{observable_decoder_forward.1} parent=111 // pred_check
          %p885 = pneg %p238
        $region114: #{observable_decoder_forward.1} parent=111 // pred_check_branch
          %887 = sbr.rel (%p885) target = $region116
        $region115: #{observable_decoder_forward.1} parent=111 // pred_region
          %s888 = sand.u32 %s223, 1
          %s889 = sand.u32 %s223, 1
          %s890 = smul.addr %s889, 40
          %s891 = scalar_lea.vmem [#allocation2], %s890
        $region116: #{observable_decoder_forward.1} parent=111 // pred_fallthru
          _
      $region112: #{observable_decoder_forward.1} parent=5 // pred_fallthru
        _
    $region6: #{observable_decoder_forward.1} parent=1 // loop_footer
      %s19 = sadd.s32 1, %s15
    $region7: #{observable_decoder_forward.1} parent=1 // loop_footer_branch
      %14 = sbr.rel target = $region3
    $region8: #{observable_decoder_forward.1} parent=1 // loop_exit
      _

</llo_original>
